<compile_context>
chip_gen: v6e
topology: v6e:2x2x1
jax: 0.10.0
libtpu: 0.0.40
codegen_flags: <defaults>
</compile_context>

<pallas_src>
import functools

import jax
import jax.numpy as jnp
from jax.experimental import pallas as pl
from jax.experimental.pallas import tpu as pltpu


# --------------------------------------------------------------------------- #
# Kernel
# --------------------------------------------------------------------------- #
def _mlp_kernel(x_ref,
                w1_ref, t1_ref,
                w2_ref, t2_ref,
                w3_ref, b3_ref,
                o_ref,
                *, min_value, max_value):
    # Layer 1: (Linear + folded BN) -> ReLU   (Dropout = identity in eval)
    x = x_ref[...].astype(jnp.bfloat16)
    h = jnp.dot(x, w1_ref[...], preferred_element_type=jnp.float32) + t1_ref[...]
    h = jnp.maximum(h, 0.0)

    # Layer 2: (Linear + folded BN)           (no ReLU in this block)
    h = jnp.dot(h.astype(jnp.bfloat16), w2_ref[...],
                preferred_element_type=jnp.float32) + t2_ref[...]

    # Output layer: Linear(hidden, out_dim)   (w3 columns zero-padded to 128)
    out = jnp.dot(h.astype(jnp.bfloat16), w3_ref[...],
                  preferred_element_type=jnp.float32) + b3_ref[...]

    # Eval-mode clamp (PyTorch module clamps only when BOTH bounds are set).
    if min_value is not None and max_value is not None:
        out = jnp.clip(out, min_value, max_value)

    # Store only the real output columns (lane-narrow but tiny writeback).
    o_ref[...] = out[:, : o_ref.shape[1]].astype(o_ref.dtype)


# --------------------------------------------------------------------------- #
# Parameter preparation (done ONCE, outside the per-call path)
# --------------------------------------------------------------------------- #
def _round_up(n, m):
    return ((n + m - 1) // m) * m


def prepare_params(params):
    """Fold eval-mode BN + linear bias into the weights, pad feature dims to
    lane width, and cast weights to bf16.  Call once; reuse across forwards."""
    D, H = params["w1"].shape
    out_dim = params["w3"].shape[1]
    Hp = _round_up(H, 128)
    Op = _round_up(out_dim, 128)

    w1 = params["w1"] * params["s1"]                      # (D, H)
    t1 = params["b1"] * params["s1"] + params["t1"]       # (1, H)
    w2 = params["w2"] * params["s2"]                      # (H, H)
    t2 = params["b2"] * params["s2"] + params["t2"]       # (1, H)
    w3, b3 = params["w3"], params["b3"]                   # (H, out), (1, out)

    f32, bf16 = jnp.float32, jnp.bfloat16
    w1p = jnp.zeros((D, Hp), f32).at[:, :H].set(w1).astype(bf16)
    t1p = jnp.zeros((1, Hp), f32).at[:, :H].set(t1)
    w2p = jnp.zeros((Hp, Hp), f32).at[:H, :H].set(w2).astype(bf16)
    t2p = jnp.zeros((1, Hp), f32).at[:, :H].set(t2)
    w3p = jnp.zeros((Hp, Op), f32).at[:H, :out_dim].set(w3).astype(bf16)
    b3p = jnp.zeros((1, Op), f32).at[:, :out_dim].set(b3)

    return dict(w1=w1p, t1=t1p, w2=w2p, t2=t2p, w3=w3p, b3=b3p,
                dims=(D, H, out_dim))


# --------------------------------------------------------------------------- #
# Forward
# --------------------------------------------------------------------------- #
def _choose_tm(B, D, Hp, block_batch=None):
    """Batch tile sized by bytes (~2 MiB live per-row state) to amortize the
    ~0.35us per-grid-step overhead, capped so the grid has >=2 steps (lets the
    'parallel' axis shard across both TensorCores on v7x; harmless elsewhere)."""
    row_bytes = 4 * (D + 2 * Hp)            # x row (f32) + ~2 live f32 intermediates
    tm = (2 * 1024 * 1024) // row_bytes
    tm = max(tm, 256)
    tm = min(tm, 2048)
    if block_batch is not None:
        tm = min(tm, block_batch)
    tm = min(tm, B)
    if B >= 16:
        tm = min(tm, -(-B // 2))            # at least 2 grid steps
    return max(8, _round_up(tm, 8))


def _vmem_limit_bytes(est_bytes):
    """Generation-aware VMEM limit: <=56 MiB on v7x-class (64 MiB physical),
    up to ~110 MiB on v5e/v6e (128 MiB physical)."""
    try:
        cap = int(pltpu.get_tpu_info().vmem_capacity_bytes)
    except Exception:
        cap = 128 * 1024 * 1024
    if cap <= 64 * 1024 * 1024:
        hard = cap - 8 * 1024 * 1024
    else:
        hard = min(cap - 16 * 1024 * 1024, 110 * 1024 * 1024)
    return int(min(max(int(1.5 * est_bytes), 32 * 1024 * 1024), hard))


def mlp_forward(x, prep, *, min_value=None, max_value=None, block_batch=None):
    """Fused MLP forward (eval mode) via one Pallas call with a batch grid.

    x: (B, D_in) array; prep: output of prepare_params (bf16 folded weights).
    """
    D, H, out_dim = prep["dims"]
    B = x.shape[0]
    assert x.shape[1] == D, (x.shape, D)
    Hp = prep["w1"].shape[1]
    Op = prep["w3"].shape[1]

    x = x.astype(jnp.float32)
    TM = _choose_tm(B, D, Hp, block_batch)
    grid_steps = -(-B // TM)
    Bp = grid_steps * TM
    if Bp != B:
        # Row-pad only (no feature padding, no copy at all when B % TM == 0).
        x = jnp.pad(x, ((0, Bp - B), (0, 0)))

    kernel = functools.partial(_mlp_kernel,
                               min_value=min_value, max_value=max_value)

    weight_shapes = [(D, Hp), (1, Hp), (Hp, Hp), (1, Hp), (Hp, Op), (1, Op)]
    weight_args = (prep["w1"], prep["t1"], prep["w2"], prep["t2"],
                   prep["w3"], prep["b3"])

    # VMEM budget: resident bf16 weights (+f32 shifts), double-buffered x/out
    # tiles, and live f32 intermediates.
    est = (sum(a * b for a, b in weight_shapes[0::2]) * 2
           + (2 * Hp + Op) * 4
           + 2 * TM * D * 4 + 2 * TM * out_dim * 4
           + 3 * TM * Hp * 4)
    vmem_limit = _vmem_limit_bytes(est)
    # TODO(synk): for very large hidden dims (resident weights > VMEM limit,
    # e.g. H >= ~2048 on v7x) a hidden-dim-tiled schedule with a VMEM
    # accumulator would be needed; not implemented here.

    flops = 2 * Bp * (D * Hp + Hp * Hp + Hp * Op)
    bytes_accessed = (Bp * D * 4 + Bp * out_dim * 4
                      + sum(a * b for a, b in weight_shapes[0::2]) * 2
                      + (2 * Hp + Op) * 4)
    cost = pl.CostEstimate(flops=flops, transcendentals=0,
                           bytes_accessed=bytes_accessed)

    def _weight_spec(shape, single_buffer):
        if single_buffer:
            # Constant index map -> the block never changes; single-buffer it.
            return pl.BlockSpec(shape, lambda i: (0, 0),
                                pipeline_mode=pl.Buffered(1))
        return pl.BlockSpec(shape, lambda i: (0, 0))

    def _run(single_buffer):
        in_specs = [pl.BlockSpec((TM, D), lambda i: (i, 0))]
        in_specs += [_weight_spec(s, single_buffer) for s in weight_shapes]
        out_specs = pl.BlockSpec((TM, out_dim), lambda i: (i, 0))
        return pl.pallas_call(
            kernel,
            out_shape=jax.ShapeDtypeStruct((Bp, out_dim), jnp.float32),
            grid=(grid_steps,),
            in_specs=in_specs,
            out_specs=out_specs,
            compiler_params=pltpu.CompilerParams(
                dimension_semantics=("parallel",),
                vmem_limit_bytes=vmem_limit,
            ),
            cost_estimate=cost,
        )(x, *weight_args)

    try:
        out_padded = _run(True)
    except Exception:
        # Fallback if this JAX build rejects pipeline_mode=pl.Buffered(1).
        out_padded = _run(False)

    return out_padded[:B]


# --------------------------------------------------------------------------- #
# Synthetic parameters + references
# --------------------------------------------------------------------------- #
def init_params(key, input_emb_dim, hidden_dim, out_dim, eps=1e-5):
    """Deterministic synthetic parameters (shapes match the PyTorch module)."""
    ks = jax.random.split(key, 12)

    def linear(kw, kb, fan_in, fan_out):
        bound = 1.0 / jnp.sqrt(fan_in)
        w = jax.random.uniform(kw, (fan_in, fan_out), jnp.float32, -bound, bound)
        b = jax.random.uniform(kb, (1, fan_out), jnp.float32, -bound, bound)
        return w, b

    def bn(kg, kb, km, kv, dim):
        gamma = 1.0 + 0.1 * jax.random.normal(kg, (1, dim), jnp.float32)
        beta = 0.1 * jax.random.normal(kb, (1, dim), jnp.float32)
        mean = 0.1 * jax.random.normal(km, (1, dim), jnp.float32)
        var = jax.random.uniform(kv, (1, dim), jnp.float32, 0.5, 1.5)
        scale = gamma / jnp.sqrt(var + eps)     # eval-mode BN as scale/shift
        shift = beta - mean * scale
        return scale, shift

    w1, b1 = linear(ks[0], ks[1], input_emb_dim, hidden_dim)
    s1, t1 = bn(ks[2], ks[3], ks[4], ks[5], hidden_dim)
    w2, b2 = linear(ks[6], ks[7], hidden_dim, hidden_dim)
    s2, t2 = bn(ks[8], ks[9], ks[10], ks[11], hidden_dim)
    kw3, kb3 = jax.random.split(jax.random.fold_in(key, 99))
    w3, b3 = linear(kw3, kb3, hidden_dim, out_dim)

    return dict(w1=w1, b1=b1, s1=s1, t1=t1,
                w2=w2, b2=b2, s2=s2, t2=t2,
                w3=w3, b3=b3)


def mlp_reference_f32(x, p, min_value=None, max_value=None):
    """Pure-JAX f32 reference (eval-mode semantics of the PyTorch module)."""
    h = x @ p["w1"] + p["b1"]
    h = h * p["s1"] + p["t1"]
    h = jnp.maximum(h, 0.0)
    h = h @ p["w2"] + p["b2"]
    h = h * p["s2"] + p["t2"]
    out = h @ p["w3"] + p["b3"]
    if min_value is not None and max_value is not None:
        out = jnp.clip(out, min_value, max_value)
    return out


def mlp_reference_bf16(x, prep, min_value=None, max_value=None):
    """Pure-JAX reference reproducing the kernel's bf16-matmul arithmetic."""
    _, _, out_dim = prep["dims"]
    f32 = jnp.float32
    h = jnp.dot(x.astype(jnp.bfloat16), prep["w1"],
                preferred_element_type=f32) + prep["t1"]
    h = jnp.maximum(h, 0.0)
    h = jnp.dot(h.astype(jnp.bfloat16), prep["w2"],
                preferred_element_type=f32) + prep["t2"]
    out = jnp.dot(h.astype(jnp.bfloat16), prep["w3"],
                  preferred_element_type=f32) + prep["b3"]
    if min_value is not None and max_value is not None:
        out = jnp.clip(out, min_value, max_value)
    return out[:, :out_dim]


# --------------------------------------------------------------------------- #
# Main
# --------------------------------------------------------------------------- #
if __name__ == "__main__":
    B, D_IN, HIDDEN, OUT = 8, 32, 32, 1
    MIN_V, MAX_V = -0.5, 0.5

    key = jax.random.PRNGKey(0)
    kx, kp = jax.random.split(key)
    x = jax.random.normal(kx, (B, D_IN), jnp.float32)
    params = init_params(kp, D_IN, HIDDEN, OUT)

    # Fold BN/bias + pad + cast to bf16 ONCE (hoisted out of the forward path).
    prep = prepare_params(params)

    # --- small batch, with clamp ---
    out = jax.block_until_ready(
        mlp_forward(x, prep, min_value=MIN_V, max_value=MAX_V))
    assert out.shape == (B, OUT), out.shape
    ref_b = mlp_reference_bf16(x, prep, MIN_V, MAX_V)
    ref_f = mlp_reference_f32(x, params, MIN_V, MAX_V)
    assert jnp.allclose(out, ref_b, atol=1e-3, rtol=1e-3), "mismatch vs bf16 ref"
    assert jnp.allclose(out, ref_f, atol=6e-2, rtol=6e-2), "mismatch vs f32 ref"

    # --- small batch, no clamp branch ---
    out_nc = jax.block_until_ready(mlp_forward(x, prep))
    assert jnp.allclose(out_nc, mlp_reference_bf16(x, prep),
                        atol=1e-3, rtol=1e-3), "mismatch (no clamp)"

    # --- larger batch: exercises the batch-tiled grid + row-padding path ---
    B2 = 1000
    x2 = jax.random.normal(jax.random.fold_in(key, 7), (B2, D_IN), jnp.float32)
    out2 = jax.block_until_ready(
        mlp_forward(x2, prep, min_value=MIN_V, max_value=MAX_V, block_batch=256))
    assert out2.shape == (B2, OUT), out2.shape
    assert jnp.allclose(out2, mlp_reference_bf16(x2, prep, MIN_V, MAX_V),
                        atol=1e-3, rtol=1e-3), "mismatch vs bf16 ref (tiled)"
    assert jnp.allclose(out2, mlp_reference_f32(x2, params, MIN_V, MAX_V),
                        atol=6e-2, rtol=6e-2), "mismatch vs f32 ref (tiled)"

    # TODO(synk): training-mode batch statistics / dropout RNG are not
    # implemented (kernel reproduces eval-mode forward, including the clamp).
    print("KERNEL_OK")
</pallas_src>

<mosaic_0001>
module attributes {stable_mosaic.version = 11 : i64} {
  func.func @_mlp_kernel(%arg0: i32, %arg1: memref<8x32xf32, #tpu.memory_space<vmem>>, %arg2: memref<32x128xbf16, #tpu.memory_space<vmem>>, %arg3: memref<1x128xf32, #tpu.memory_space<vmem>>, %arg4: memref<128x128xbf16, #tpu.memory_space<vmem>>, %arg5: memref<1x128xf32, #tpu.memory_space<vmem>>, %arg6: memref<128x128xbf16, #tpu.memory_space<vmem>>, %arg7: memref<1x128xf32, #tpu.memory_space<vmem>>, %arg8: memref<8x1xf32, #tpu.memory_space<vmem>>) attributes {dimension_semantics = [#tpu.dimension_semantics<parallel>], iteration_bounds = array<i64: 1>, scalar_prefetch = 0 : i64, scratch_operands = 0 : i64, tpu.core_type = #tpu.core_type<tc>, window_params = [{transform_indices = @transform_0, window_bounds = array<i64: 8, 32>}, {pipeline_mode = #tpu.pipeline_mode<synchronous>, transform_indices = @transform_1, window_bounds = array<i64: 32, 128>}, {pipeline_mode = #tpu.pipeline_mode<synchronous>, transform_indices = @transform_2, window_bounds = array<i64: 1, 128>}, {pipeline_mode = #tpu.pipeline_mode<synchronous>, transform_indices = @transform_3, window_bounds = array<i64: 128, 128>}, {pipeline_mode = #tpu.pipeline_mode<synchronous>, transform_indices = @transform_4, window_bounds = array<i64: 1, 128>}, {pipeline_mode = #tpu.pipeline_mode<synchronous>, transform_indices = @transform_5, window_bounds = array<i64: 128, 128>}, {pipeline_mode = #tpu.pipeline_mode<synchronous>, transform_indices = @transform_6, window_bounds = array<i64: 1, 128>}, {transform_indices = @transform_7, window_bounds = array<i64: 8, 1>}]} {
    %c0 = arith.constant 0 : index
    %c0_0 = arith.constant 0 : index
    %0 = vector.load %arg1[%c0, %c0_0] : memref<8x32xf32, #tpu.memory_space<vmem>>, vector<8x32xf32>
    %1 = arith.truncf %0 : vector<8x32xf32> to vector<8x32xbf16>
    %c0_1 = arith.constant 0 : index
    %c0_2 = arith.constant 0 : index
    %2 = vector.load %arg2[%c0_1, %c0_2] : memref<32x128xbf16, #tpu.memory_space<vmem>>, vector<32x128xbf16>
    %cst = arith.constant dense<0.000000e+00> : vector<8x128xf32>
    %3 = tpu.matmul %1, %2, %cst {dimension_numbers = #tpu.dot_dimension_numbers<[1], [0], [0], [1], [0, 0, 1, 1], [], []>} : vector<8x32xbf16>, vector<32x128xbf16>, vector<8x128xf32> -> vector<8x128xf32>
    %c0_3 = arith.constant 0 : index
    %c0_4 = arith.constant 0 : index
    %4 = vector.load %arg3[%c0_3, %c0_4] : memref<1x128xf32, #tpu.memory_space<vmem>>, vector<1x128xf32>
    %5 = vector.broadcast %4 : vector<1x128xf32> to vector<8x128xf32>
    %6 = arith.addf %3, %5 : vector<8x128xf32>
    %cst_5 = arith.constant 0.000000e+00 : f32
    %7 = vector.broadcast %cst_5 : f32 to vector<8x128xf32>
    %8 = arith.maximumf %6, %7 : vector<8x128xf32>
    %9 = arith.truncf %8 : vector<8x128xf32> to vector<8x128xbf16>
    %c0_6 = arith.constant 0 : index
    %c0_7 = arith.constant 0 : index
    %10 = vector.load %arg4[%c0_6, %c0_7] : memref<128x128xbf16, #tpu.memory_space<vmem>>, vector<128x128xbf16>
    %cst_8 = arith.constant dense<0.000000e+00> : vector<8x128xf32>
    %11 = tpu.matmul %9, %10, %cst_8 {dimension_numbers = #tpu.dot_dimension_numbers<[1], [0], [0], [1], [0, 0, 1, 1], [], []>} : vector<8x128xbf16>, vector<128x128xbf16>, vector<8x128xf32> -> vector<8x128xf32>
    %c0_9 = arith.constant 0 : index
    %c0_10 = arith.constant 0 : index
    %12 = vector.load %arg5[%c0_9, %c0_10] : memref<1x128xf32, #tpu.memory_space<vmem>>, vector<1x128xf32>
    %13 = vector.broadcast %12 : vector<1x128xf32> to vector<8x128xf32>
    %14 = arith.addf %11, %13 : vector<8x128xf32>
    %15 = arith.truncf %14 : vector<8x128xf32> to vector<8x128xbf16>
    %c0_11 = arith.constant 0 : index
    %c0_12 = arith.constant 0 : index
    %16 = vector.load %arg6[%c0_11, %c0_12] : memref<128x128xbf16, #tpu.memory_space<vmem>>, vector<128x128xbf16>
    %cst_13 = arith.constant dense<0.000000e+00> : vector<8x128xf32>
    %17 = tpu.matmul %15, %16, %cst_13 {dimension_numbers = #tpu.dot_dimension_numbers<[1], [0], [0], [1], [0, 0, 1, 1], [], []>} : vector<8x128xbf16>, vector<128x128xbf16>, vector<8x128xf32> -> vector<8x128xf32>
    %c0_14 = arith.constant 0 : index
    %c0_15 = arith.constant 0 : index
    %18 = vector.load %arg7[%c0_14, %c0_15] : memref<1x128xf32, #tpu.memory_space<vmem>>, vector<1x128xf32>
    %19 = vector.broadcast %18 : vector<1x128xf32> to vector<8x128xf32>
    %20 = arith.addf %17, %19 : vector<8x128xf32>
    %cst_16 = arith.constant -5.000000e-01 : f32
    %cst_17 = arith.constant 5.000000e-01 : f32
    %21 = vector.broadcast %cst_16 : f32 to vector<8x128xf32>
    %22 = arith.maximumf %21, %20 : vector<8x128xf32>
    %23 = vector.broadcast %cst_17 : f32 to vector<8x128xf32>
    %24 = arith.minimumf %23, %22 : vector<8x128xf32>
    %25 = vector.extract_strided_slice %24 {offsets = [0, 0], sizes = [8, 1], strides = [1, 1]} : vector<8x128xf32> to vector<8x1xf32>
    %c0_18 = arith.constant 0 : index
    %c0_19 = arith.constant 0 : index
    %26 = vector.load %arg8[%c0_18, %c0_19] : memref<8x1xf32, #tpu.memory_space<vmem>>, vector<8x1xf32>
    tpu.vector_store %arg8[%c0_18, %c0_19], %25 {strides = array<i32>} : memref<8x1xf32, #tpu.memory_space<vmem>>, vector<8x1xf32>,
    return
  }
  func.func @transform_0(%arg0: i32) -> (i32, i32) {
    %c0_i32 = arith.constant 0 : i32
    %c0_i32_0 = arith.constant 0 : i32
    return %arg0, %c0_i32 : i32, i32
  }
  func.func @transform_1(%arg0: i32) -> (i32, i32) {
    %c0_i32 = arith.constant 0 : i32
    %c0_i32_0 = arith.constant 0 : i32
    %c0_i32_1 = arith.constant 0 : i32
    return %c0_i32, %c0_i32_0 : i32, i32
  }
  func.func @transform_2(%arg0: i32) -> (i32, i32) {
    %c0_i32 = arith.constant 0 : i32
    %c0_i32_0 = arith.constant 0 : i32
    %c0_i32_1 = arith.constant 0 : i32
    return %c0_i32, %c0_i32_0 : i32, i32
  }
  func.func @transform_3(%arg0: i32) -> (i32, i32) {
    %c0_i32 = arith.constant 0 : i32
    %c0_i32_0 = arith.constant 0 : i32
    %c0_i32_1 = arith.constant 0 : i32
    return %c0_i32, %c0_i32_0 : i32, i32
  }
  func.func @transform_4(%arg0: i32) -> (i32, i32) {
    %c0_i32 = arith.constant 0 : i32
    %c0_i32_0 = arith.constant 0 : i32
    %c0_i32_1 = arith.constant 0 : i32
    return %c0_i32, %c0_i32_0 : i32, i32
  }
  func.func @transform_5(%arg0: i32) -> (i32, i32) {
    %c0_i32 = arith.constant 0 : i32
    %c0_i32_0 = arith.constant 0 : i32
    %c0_i32_1 = arith.constant 0 : i32
    return %c0_i32, %c0_i32_0 : i32, i32
  }
  func.func @transform_6(%arg0: i32) -> (i32, i32) {
    %c0_i32 = arith.constant 0 : i32
    %c0_i32_0 = arith.constant 0 : i32
    %c0_i32_1 = arith.constant 0 : i32
    return %c0_i32, %c0_i32_0 : i32, i32
  }
  func.func @transform_7(%arg0: i32) -> (i32, i32) {
    %c0_i32 = arith.constant 0 : i32
    %c0_i32_0 = arith.constant 0 : i32
    return %arg0, %c0_i32 : i32, i32
  }
}

module attributes {stable_mosaic.version = 11 : i64} {
  func.func @_mlp_kernel(%arg0: i32, %arg1: memref<8x32xf32, #tpu.memory_space<vmem>>, %arg2: memref<32x128xbf16, #tpu.memory_space<vmem>>, %arg3: memref<1x128xf32, #tpu.memory_space<vmem>>, %arg4: memref<128x128xbf16, #tpu.memory_space<vmem>>, %arg5: memref<1x128xf32, #tpu.memory_space<vmem>>, %arg6: memref<128x128xbf16, #tpu.memory_space<vmem>>, %arg7: memref<1x128xf32, #tpu.memory_space<vmem>>, %arg8: memref<8x1xf32, #tpu.memory_space<vmem>>) attributes {dimension_semantics = [#tpu.dimension_semantics<parallel>], iteration_bounds = array<i64: 1>, scalar_prefetch = 0 : i64, scratch_operands = 0 : i64, tpu.core_type = #tpu.core_type<tc>, window_params = [{transform_indices = @transform_0, window_bounds = array<i64: 8, 32>}, {pipeline_mode = #tpu.pipeline_mode<synchronous>, transform_indices = @transform_1, window_bounds = array<i64: 32, 128>}, {pipeline_mode = #tpu.pipeline_mode<synchronous>, transform_indices = @transform_2, window_bounds = array<i64: 1, 128>}, {pipeline_mode = #tpu.pipeline_mode<synchronous>, transform_indices = @transform_3, window_bounds = array<i64: 128, 128>}, {pipeline_mode = #tpu.pipeline_mode<synchronous>, transform_indices = @transform_4, window_bounds = array<i64: 1, 128>}, {pipeline_mode = #tpu.pipeline_mode<synchronous>, transform_indices = @transform_5, window_bounds = array<i64: 128, 128>}, {pipeline_mode = #tpu.pipeline_mode<synchronous>, transform_indices = @transform_6, window_bounds = array<i64: 1, 128>}, {transform_indices = @transform_7, window_bounds = array<i64: 8, 1>}]} {
    %c0 = arith.constant 0 : index
    %c0_0 = arith.constant 0 : index
    %0 = vector.load %arg1[%c0, %c0_0] : memref<8x32xf32, #tpu.memory_space<vmem>>, vector<8x32xf32>
    %1 = arith.truncf %0 : vector<8x32xf32> to vector<8x32xbf16>
    %c0_1 = arith.constant 0 : index
    %c0_2 = arith.constant 0 : index
    %2 = vector.load %arg2[%c0_1, %c0_2] : memref<32x128xbf16, #tpu.memory_space<vmem>>, vector<32x128xbf16>
    %cst = arith.constant dense<0.000000e+00> : vector<8x128xf32>
    %3 = tpu.matmul %1, %2, %cst {dimension_numbers = #tpu.dot_dimension_numbers<[1], [0], [0], [1], [0, 0, 1, 1], [], []>} : vector<8x32xbf16>, vector<32x128xbf16>, vector<8x128xf32> -> vector<8x128xf32>
    %c0_3 = arith.constant 0 : index
    %c0_4 = arith.constant 0 : index
    %4 = vector.load %arg3[%c0_3, %c0_4] : memref<1x128xf32, #tpu.memory_space<vmem>>, vector<1x128xf32>
    %5 = vector.broadcast %4 : vector<1x128xf32> to vector<8x128xf32>
    %6 = arith.addf %3, %5 : vector<8x128xf32>
    %cst_5 = arith.constant 0.000000e+00 : f32
    %7 = vector.broadcast %cst_5 : f32 to vector<8x128xf32>
    %8 = arith.maximumf %6, %7 : vector<8x128xf32>
    %9 = arith.truncf %8 : vector<8x128xf32> to vector<8x128xbf16>
    %c0_6 = arith.constant 0 : index
    %c0_7 = arith.constant 0 : index
    %10 = vector.load %arg4[%c0_6, %c0_7] : memref<128x128xbf16, #tpu.memory_space<vmem>>, vector<128x128xbf16>
    %cst_8 = arith.constant dense<0.000000e+00> : vector<8x128xf32>
    %11 = tpu.matmul %9, %10, %cst_8 {dimension_numbers = #tpu.dot_dimension_numbers<[1], [0], [0], [1], [0, 0, 1, 1], [], []>} : vector<8x128xbf16>, vector<128x128xbf16>, vector<8x128xf32> -> vector<8x128xf32>
    %c0_9 = arith.constant 0 : index
    %c0_10 = arith.constant 0 : index
    %12 = vector.load %arg5[%c0_9, %c0_10] : memref<1x128xf32, #tpu.memory_space<vmem>>, vector<1x128xf32>
    %13 = vector.broadcast %12 : vector<1x128xf32> to vector<8x128xf32>
    %14 = arith.addf %11, %13 : vector<8x128xf32>
    %15 = arith.truncf %14 : vector<8x128xf32> to vector<8x128xbf16>
    %c0_11 = arith.constant 0 : index
    %c0_12 = arith.constant 0 : index
    %16 = vector.load %arg6[%c0_11, %c0_12] : memref<128x128xbf16, #tpu.memory_space<vmem>>, vector<128x128xbf16>
    %cst_13 = arith.constant dense<0.000000e+00> : vector<8x128xf32>
    %17 = tpu.matmul %15, %16, %cst_13 {dimension_numbers = #tpu.dot_dimension_numbers<[1], [0], [0], [1], [0, 0, 1, 1], [], []>} : vector<8x128xbf16>, vector<128x128xbf16>, vector<8x128xf32> -> vector<8x128xf32>
    %c0_14 = arith.constant 0 : index
    %c0_15 = arith.constant 0 : index
    %18 = vector.load %arg7[%c0_14, %c0_15] : memref<1x128xf32, #tpu.memory_space<vmem>>, vector<1x128xf32>
    %19 = vector.broadcast %18 : vector<1x128xf32> to vector<8x128xf32>
    %20 = arith.addf %17, %19 : vector<8x128xf32>
    %cst_16 = arith.constant -5.000000e-01 : f32
    %cst_17 = arith.constant 5.000000e-01 : f32
    %21 = vector.broadcast %cst_16 : f32 to vector<8x128xf32>
    %22 = arith.maximumf %21, %20 : vector<8x128xf32>
    %23 = vector.broadcast %cst_17 : f32 to vector<8x128xf32>
    %24 = arith.minimumf %23, %22 : vector<8x128xf32>
    %25 = vector.extract_strided_slice %24 {offsets = [0, 0], sizes = [8, 1], strides = [1, 1]} : vector<8x128xf32> to vector<8x1xf32>
    %c0_18 = arith.constant 0 : index
    %c0_19 = arith.constant 0 : index
    %26 = vector.load %arg8[%c0_18, %c0_19] : memref<8x1xf32, #tpu.memory_space<vmem>>, vector<8x1xf32>
    tpu.vector_store %arg8[%c0_18, %c0_19], %25 {strides = array<i32>} : memref<8x1xf32, #tpu.memory_space<vmem>>, vector<8x1xf32>,
    return
  }
  func.func @transform_0(%arg0: i32) -> (i32, i32) {
    %c0_i32 = arith.constant 0 : i32
    %c0_i32_0 = arith.constant 0 : i32
    return %arg0, %c0_i32 : i32, i32
  }
  func.func @transform_1(%arg0: i32) -> (i32, i32) {
    %c0_i32 = arith.constant 0 : i32
    %c0_i32_0 = arith.constant 0 : i32
    %c0_i32_1 = arith.constant 0 : i32
    return %c0_i32, %c0_i32_0 : i32, i32
  }
  func.func @transform_2(%arg0: i32) -> (i32, i32) {
    %c0_i32 = arith.constant 0 : i32
    %c0_i32_0 = arith.constant 0 : i32
    %c0_i32_1 = arith.constant 0 : i32
    return %c0_i32, %c0_i32_0 : i32, i32
  }
  func.func @transform_3(%arg0: i32) -> (i32, i32) {
    %c0_i32 = arith.constant 0 : i32
    %c0_i32_0 = arith.constant 0 : i32
    %c0_i32_1 = arith.constant 0 : i32
    return %c0_i32, %c0_i32_0 : i32, i32
  }
  func.func @transform_4(%arg0: i32) -> (i32, i32) {
    %c0_i32 = arith.constant 0 : i32
    %c0_i32_0 = arith.constant 0 : i32
    %c0_i32_1 = arith.constant 0 : i32
    return %c0_i32, %c0_i32_0 : i32, i32
  }
  func.func @transform_5(%arg0: i32) -> (i32, i32) {
    %c0_i32 = arith.constant 0 : i32
    %c0_i32_0 = arith.constant 0 : i32
    %c0_i32_1 = arith.constant 0 : i32
    return %c0_i32, %c0_i32_0 : i32, i32
  }
  func.func @transform_6(%arg0: i32) -> (i32, i32) {
    %c0_i32 = arith.constant 0 : i32
    %c0_i32_0 = arith.constant 0 : i32
    %c0_i32_1 = arith.constant 0 : i32
    return %c0_i32, %c0_i32_0 : i32, i32
  }
  func.func @transform_7(%arg0: i32) -> (i32, i32) {
    %c0_i32 = arith.constant 0 : i32
    %c0_i32_0 = arith.constant 0 : i32
    return %arg0, %c0_i32 : i32, i32
  }
}

</mosaic_0001>

<llo_original>
// kernel: tpu_custom_call.1
$region0: #{tpu_custom_call.1}
  #allocation0 [shape = 'u32[]', space=smem, size = 0x4, offset = 0x4, fixed_abs, tag = 'smem constant byte address 0x4 - core index']
  #allocation1 [shape = 'u32[144,128]{1,0:T(1,128)}', space=vmem, size = 0x12000, scoped, tag = 'internal scratch']
  %s0 = inlined_call_operand.hbm [shape: f32[8,32], index: 0, kind: input, shape index: {}]
  %s1 = inlined_call_operand.hbm [shape: bf16[32,128], index: 1, kind: input, shape index: {}]
  %s2 = inlined_call_operand.vmem [shape: f32[1,128], index: 2, kind: input, shape index: {}]
  %s3 = inlined_call_operand.hbm [shape: bf16[128,128], index: 3, kind: input, shape index: {}]
  %s4 = inlined_call_operand.vmem [shape: f32[1,128], index: 4, kind: input, shape index: {}]
  %s5 = inlined_call_operand.hbm [shape: bf16[128,128], index: 5, kind: input, shape index: {}]
  %s6 = inlined_call_operand.vmem [shape: f32[1,128], index: 6, kind: input, shape index: {}]
  %s7 = inlined_call_operand.vmem [shape: f32[8,1], index: 7, kind: output, shape index: {}]
  %s8 = sld [smem:[#allocation0]]
  $region54: #{tpu_custom_call.1} parent=0
    _
  %s10 = ssub.s32 1, %s8
  %s11 = scalar_select 0, %s10, %s8
  $region1: #{tpu_custom_call.1} parent=0
    #allocation2 [shape = 'u8[4096]{0}', space=vmem, size = 0x1000, scoped, tag = 'input window, operand 0, single buffered']
    #allocation3 [shape = 's32[1]{0}', space=sflag, size = 0x4, scoped, tag = 'scoped memory for tpu_custom_call.1']
    #allocation4 [shape = 'u8[8192]{0}', space=vmem, size = 0x2000, scoped, tag = 'input window, operand 1, single buffered']
    #allocation5 [shape = 's32[1]{0}', space=sflag, size = 0x4, scoped, tag = 'scoped memory for tpu_custom_call.1']
    #allocation6 [shape = 'u8[32768]{0}', space=vmem, size = 0x8000, scoped, tag = 'input window, operand 3, single buffered']
    #allocation7 [shape = 'u8[32768]{0}', space=vmem, size = 0x8000, scoped, tag = 'input window, operand 5, single buffered']
    #allocation8 [shape = 's32[1]{0}', space=sflag, size = 0x4, scoped, tag = 'scoped memory for tpu_custom_call.1']
    %12 = vsyncpa [#allocation3], 0
    %13 = vsyncpa [#allocation5], 0
    %14 = vsyncpa [#allocation8], 0
    // Predicated region
    $region2: #{tpu_custom_call.1} parent=1 // pred_check
      _
    $region3: #{tpu_custom_call.1} parent=1 // pred_check_branch
      %16 = sbr.rel (0) target = $region5
    $region4: #{tpu_custom_call.1} parent=1 // pred_region
      %s18 = ssub.s32 128, 128
      %19 = vsyncadd [#allocation3], %s18
      %s21 = sshll.u32 [#allocation2], 4
      %s22 = int_to_ptr.vmem [resolvable:$true] %s21
      %24 = dma.hbm_to_vmem [thread:$0]  %s0, 128, %s22, [#allocation3]
    $region5: #{tpu_custom_call.1} parent=1 // pred_fallthru
      _
    // Predicated region
    $region6: #{tpu_custom_call.1} parent=1 // pred_check
      _
    $region7: #{tpu_custom_call.1} parent=1 // pred_check_branch
      %26 = sbr.rel (0) target = $region9
    $region8: #{tpu_custom_call.1} parent=1 // pred_region
      %s28 = ssub.s32 256, 256
      %29 = vsyncadd [#allocation5], %s28
      %s30 = sshll.u32 [#allocation4], 4
      %s31 = int_to_ptr.vmem [resolvable:$true] %s30
      %36 = dma.hbm_to_vmem [thread:$0]  %s1, 256, %s31, [#allocation5], 64, 64, 4
    $region9: #{tpu_custom_call.1} parent=1 // pred_fallthru
      _
    // Predicated region
    $region10: #{tpu_custom_call.1} parent=1 // pred_check
      _
    $region11: #{tpu_custom_call.1} parent=1 // pred_check_branch
      %38 = sbr.rel (0) target = $region13
    $region12: #{tpu_custom_call.1} parent=1 // pred_region
      _
    $region13: #{tpu_custom_call.1} parent=1 // pred_fallthru
      _
    // Predicated region
    $region14: #{tpu_custom_call.1} parent=1 // pred_check
      _
    $region15: #{tpu_custom_call.1} parent=1 // pred_check_branch
      %40 = sbr.rel (0) target = $region17
    $region16: #{tpu_custom_call.1} parent=1 // pred_region
      %s42 = ssub.s32 1024, 1024
      %43 = vsyncadd [#allocation5], %s42
      %s44 = sshll.u32 [#allocation6], 4
      %s45 = int_to_ptr.vmem [resolvable:$true] %s44
      %50 = dma.hbm_to_vmem [thread:$0]  %s3, 1024, %s45, [#allocation5], 64, 64, 4
    $region17: #{tpu_custom_call.1} parent=1 // pred_fallthru
      _
    // Predicated region
    $region18: #{tpu_custom_call.1} parent=1 // pred_check
      _
    $region19: #{tpu_custom_call.1} parent=1 // pred_check_branch
      %52 = sbr.rel (0) target = $region21
    $region20: #{tpu_custom_call.1} parent=1 // pred_region
      _
    $region21: #{tpu_custom_call.1} parent=1 // pred_fallthru
      _
    // Predicated region
    $region22: #{tpu_custom_call.1} parent=1 // pred_check
      _
    $region23: #{tpu_custom_call.1} parent=1 // pred_check_branch
      %54 = sbr.rel (0) target = $region25
    $region24: #{tpu_custom_call.1} parent=1 // pred_region
      %s56 = ssub.s32 1024, 1024
      %57 = vsyncadd [#allocation8], %s56
      %s58 = sshll.u32 [#allocation7], 4
      %s59 = int_to_ptr.vmem [resolvable:$true] %s58
      %64 = dma.hbm_to_vmem [thread:$0]  %s5, 1024, %s59, [#allocation8], 64, 64, 4
    $region25: #{tpu_custom_call.1} parent=1 // pred_fallthru
      _
    // Predicated region
    $region26: #{tpu_custom_call.1} parent=1 // pred_check
      _
    $region27: #{tpu_custom_call.1} parent=1 // pred_check_branch
      %66 = sbr.rel (0) target = $region29
    $region28: #{tpu_custom_call.1} parent=1 // pred_region
      _
    $region29: #{tpu_custom_call.1} parent=1 // pred_fallthru
      _
    // Predicated region
    $region30: #{tpu_custom_call.1} parent=1 // pred_check
      _
    $region31: #{tpu_custom_call.1} parent=1 // pred_check_branch
      %68 = sbr.rel (0) target = $region33
    $region32: #{tpu_custom_call.1} parent=1 // pred_region
      %69 = dma.done [#allocation3], 128
    $region33: #{tpu_custom_call.1} parent=1 // pred_fallthru
      _
    // Predicated region
    $region34: #{tpu_custom_call.1} parent=1 // pred_check
      _
    $region35: #{tpu_custom_call.1} parent=1 // pred_check_branch
      %71 = sbr.rel (0) target = $region37
    $region36: #{tpu_custom_call.1} parent=1 // pred_region
      %72 = dma.done [#allocation5], 256
    $region37: #{tpu_custom_call.1} parent=1 // pred_fallthru
      _
    // Predicated region
    $region38: #{tpu_custom_call.1} parent=1 // pred_check
      _
    $region39: #{tpu_custom_call.1} parent=1 // pred_check_branch
      %74 = sbr.rel (0) target = $region41
    $region40: #{tpu_custom_call.1} parent=1 // pred_region
      %75 = dma.done [#allocation5], 1024
    $region41: #{tpu_custom_call.1} parent=1 // pred_fallthru
      _
    // Predicated region
    $region42: #{tpu_custom_call.1} parent=1 // pred_check
      _
    $region43: #{tpu_custom_call.1} parent=1 // pred_check_branch
      %77 = sbr.rel (0) target = $region45
    $region44: #{tpu_custom_call.1} parent=1 // pred_region
      %78 = dma.done [#allocation8], 1024
    $region45: #{tpu_custom_call.1} parent=1 // pred_fallthru
      _
    %v80 = vld [vmem:[#allocation2] sm:$0xff]
    %v81 = vpack.c.bf16 %v80, %v80
    %v82 = vld [vmem:[#allocation4] sm:$0xf]
    %v83 = vld [vmem:[#allocation4 + $0x4] sm:$0xf]
    %v84 = vld [vmem:[#allocation4 + $0x8] sm:$0xf]
    %v85 = vld [vmem:[#allocation4 + $0xc] sm:$0xf]
    %v86 = vld [vmem:[%s2] sm:$0x1]
    %v88 = vlaneseq
    %v89 = vshrl.u32 %v88, 7
    %v90 = vsub.s32 0, %v89
    %v91 = vrot.slane %v86, %v90
    %v97 = vunpack.c.l.b16 %v82
    %v98 = vunpack.c.l.b16 %v83
    %v99 = vunpack.c.l.b16 %v84
    %v100 = vunpack.c.l.b16 %v85
    %v101 = vpack.c.b16 %v98, %v97
    %v102 = vpack.c.b16 %v100, %v99
    %vm105 = vcmask 261120
    %v107 = vsel %vm105, %v81, 0
    %109 = vmatprep.subr.bf16.mxu0 0
    %110 = vmatpush1.bf16.msra.mxu0 0
    %111 = vmatprep.subr.bf16.mxu0 0
    %112 = vmatpush1.bf16.msra.mxu0 0
    %113 = vmatprep.subr.bf16.mxu0 0
    %114 = vmatpush1.bf16.msra.mxu0 0
    %115 = vmatprep.subr.bf16.mxu0 0
    %116 = vmatpush1.bf16.msra.mxu0 0
    %117 = vmatprep.subr.bf16.mxu0 0
    %118 = vmatpush1.bf16.msra.mxu0 0
    %119 = vmatprep.subr.bf16.mxu0 0
    %120 = vmatpush1.bf16.msra.mxu0 0
    %121 = vmatprep.subr.bf16.mxu0 0
    %122 = vmatpush1.bf16.msra.mxu0 %v102
    %123 = vmatprep.subr.bf16.mxu0 0
    %124 = vmatpush1.bf16.msra.mxu0 %v101
    %125 = vmatprep.subr.bf16.mxu0 0
    %126 = vmatpush2.bf16.msra.mxu0 0
    %127 = vmatprep.subr.bf16.mxu0 0
    %128 = vmatpush2.bf16.msra.mxu0 0
    %129 = vmatprep.subr.bf16.mxu0 0
    %130 = vmatpush2.bf16.msra.mxu0 0
    %131 = vmatprep.subr.bf16.mxu0 0
    %132 = vmatpush2.bf16.msra.mxu0 0
    %133 = vmatprep.subr.bf16.mxu0 0
    %134 = vmatpush2.bf16.msra.mxu0 0
    %135 = vmatprep.subr.bf16.mxu0 0
    %136 = vmatpush2.bf16.msra.mxu0 0
    %137 = vmatprep.subr.bf16.mxu0 0
    %138 = vmatpush2.bf16.msra.mxu0 0
    %139 = vmatprep.subr.bf16.mxu0 0
    %140 = vmatpush2.bf16.msra.mxu0 0
    %141 = vmatprep.mubr.bf16.mxu0 0
    %142 = vmatmul.mubr.bf16.gmra.mxu0 %v107
    %v143 = vpop.f32.mrf.mxu0
    %v144 = vadd.f32 %v91, %v143
    %v145 = vpop.f32.mrf.mxu0
    %v146 = vpop.f32.mrf.mxu0
    %v147 = vpop.f32.mrf.mxu0
    %148 = vdwg.mxu0
    %v149 = vmax.f32 %v144, 0.0
    %v150 = vpack.c.bf16 %v149, %v149
    %v151 = vld [vmem:[#allocation6] sm:$0xf]
    %v152 = vld [vmem:[#allocation6 + $0x4] sm:$0xf]
    %v153 = vld [vmem:[#allocation6 + $0x8] sm:$0xf]
    %v154 = vld [vmem:[#allocation6 + $0xc] sm:$0xf]
    %v155 = vld [vmem:[#allocation6 + $0x10] sm:$0xf]
    %v156 = vld [vmem:[#allocation6 + $0x14] sm:$0xf]
    %v157 = vld [vmem:[#allocation6 + $0x18] sm:$0xf]
    %v158 = vld [vmem:[#allocation6 + $0x1c] sm:$0xf]
    %v159 = vld [vmem:[#allocation6 + $0x20] sm:$0xf]
    %v160 = vld [vmem:[#allocation6 + $0x24] sm:$0xf]
    %v161 = vld [vmem:[#allocation6 + $0x28] sm:$0xf]
    %v162 = vld [vmem:[#allocation6 + $0x2c] sm:$0xf]
    %v163 = vld [vmem:[#allocation6 + $0x30] sm:$0xf]
    %v164 = vld [vmem:[#allocation6 + $0x34] sm:$0xf]
    %v165 = vld [vmem:[#allocation6 + $0x38] sm:$0xf]
    %v166 = vld [vmem:[#allocation6 + $0x3c] sm:$0xf]
    %v167 = vld [vmem:[%s4] sm:$0x1]
    %v169 = vlaneseq
    %v170 = vshrl.u32 %v169, 7
    %v171 = vsub.s32 0, %v170
    %v172 = vrot.slane %v167, %v171
    %v190 = vunpack.c.l.b16 %v151
    %v191 = vunpack.c.l.b16 %v152
    %v192 = vunpack.c.l.b16 %v153
    %v193 = vunpack.c.l.b16 %v154
    %v194 = vunpack.c.l.b16 %v155
    %v195 = vunpack.c.l.b16 %v156
    %v196 = vunpack.c.l.b16 %v157
    %v197 = vunpack.c.l.b16 %v158
    %v198 = vunpack.c.l.b16 %v159
    %v199 = vunpack.c.l.b16 %v160
    %v200 = vunpack.c.l.b16 %v161
    %v201 = vunpack.c.l.b16 %v162
    %v202 = vunpack.c.l.b16 %v163
    %v203 = vunpack.c.l.b16 %v164
    %v204 = vunpack.c.l.b16 %v165
    %v205 = vunpack.c.l.b16 %v166
    %v206 = vpack.c.b16 %v191, %v190
    %v207 = vpack.c.b16 %v193, %v192
    %v208 = vpack.c.b16 %v195, %v194
    %v209 = vpack.c.b16 %v197, %v196
    %v210 = vpack.c.b16 %v199, %v198
    %v211 = vpack.c.b16 %v201, %v200
    %v212 = vpack.c.b16 %v203, %v202
    %v213 = vpack.c.b16 %v205, %v204
    %222 = vmatprep.subr.bf16.mxu0 0
    %223 = vmatpush1.bf16.msra.mxu0 %v213
    %224 = vmatprep.subr.bf16.mxu0 0
    %225 = vmatpush1.bf16.msra.mxu0 %v212
    %226 = vmatprep.subr.bf16.mxu0 0
    %227 = vmatpush1.bf16.msra.mxu0 %v211
    %228 = vmatprep.subr.bf16.mxu0 0
    %229 = vmatpush1.bf16.msra.mxu0 %v210
    %230 = vmatprep.subr.bf16.mxu0 0
    %231 = vmatpush1.bf16.msra.mxu0 %v209
    %232 = vmatprep.subr.bf16.mxu0 0
    %233 = vmatpush1.bf16.msra.mxu0 %v208
    %234 = vmatprep.subr.bf16.mxu0 0
    %235 = vmatpush1.bf16.msra.mxu0 %v207
    %236 = vmatprep.subr.bf16.mxu0 0
    %237 = vmatpush1.bf16.msra.mxu0 %v206
    %238 = vmatprep.subr.bf16.mxu0 0
    %239 = vmatpush2.bf16.msra.mxu0 0
    %240 = vmatprep.subr.bf16.mxu0 0
    %241 = vmatpush2.bf16.msra.mxu0 0
    %242 = vmatprep.subr.bf16.mxu0 0
    %243 = vmatpush2.bf16.msra.mxu0 0
    %244 = vmatprep.subr.bf16.mxu0 0
    %245 = vmatpush2.bf16.msra.mxu0 0
    %246 = vmatprep.subr.bf16.mxu0 0
    %247 = vmatpush2.bf16.msra.mxu0 0
    %248 = vmatprep.subr.bf16.mxu0 0
    %249 = vmatpush2.bf16.msra.mxu0 0
    %250 = vmatprep.subr.bf16.mxu0 0
    %251 = vmatpush2.bf16.msra.mxu0 0
    %252 = vmatprep.subr.bf16.mxu0 0
    %253 = vmatpush2.bf16.msra.mxu0 0
    %254 = vmatprep.mubr.bf16.mxu0 0
    %255 = vmatmul.mubr.bf16.gmra.mxu0 %v150
    %v256 = vpop.f32.mrf.mxu0
    %v257 = vadd.f32 %v172, %v256
    %v258 = vpop.f32.mrf.mxu0
    %v259 = vpop.f32.mrf.mxu0
    %v260 = vpop.f32.mrf.mxu0
    %261 = vdwg.mxu0
    %v262 = vpack.c.bf16 %v257, %v257
    %v263 = vld [vmem:[#allocation7] sm:$0xf]
    %v264 = vld [vmem:[#allocation7 + $0x4] sm:$0xf]
    %v265 = vld [vmem:[#allocation7 + $0x8] sm:$0xf]
    %v266 = vld [vmem:[#allocation7 + $0xc] sm:$0xf]
    %v267 = vld [vmem:[#allocation7 + $0x10] sm:$0xf]
    %v268 = vld [vmem:[#allocation7 + $0x14] sm:$0xf]
    %v269 = vld [vmem:[#allocation7 + $0x18] sm:$0xf]
    %v270 = vld [vmem:[#allocation7 + $0x1c] sm:$0xf]
    %v271 = vld [vmem:[#allocation7 + $0x20] sm:$0xf]
    %v272 = vld [vmem:[#allocation7 + $0x24] sm:$0xf]
    %v273 = vld [vmem:[#allocation7 + $0x28] sm:$0xf]
    %v274 = vld [vmem:[#allocation7 + $0x2c] sm:$0xf]
    %v275 = vld [vmem:[#allocation7 + $0x30] sm:$0xf]
    %v276 = vld [vmem:[#allocation7 + $0x34] sm:$0xf]
    %v277 = vld [vmem:[#allocation7 + $0x38] sm:$0xf]
    %v278 = vld [vmem:[#allocation7 + $0x3c] sm:$0xf]
    %v279 = vld [vmem:[%s6] sm:$0x1]
    %v281 = vlaneseq
    %v282 = vshrl.u32 %v281, 7
    %v283 = vsub.s32 0, %v282
    %v284 = vrot.slane %v279, %v283
    %v302 = vunpack.c.l.b16 %v263
    %v303 = vunpack.c.l.b16 %v264
    %v304 = vunpack.c.l.b16 %v265
    %v305 = vunpack.c.l.b16 %v266
    %v306 = vunpack.c.l.b16 %v267
    %v307 = vunpack.c.l.b16 %v268
    %v308 = vunpack.c.l.b16 %v269
    %v309 = vunpack.c.l.b16 %v270
    %v310 = vunpack.c.l.b16 %v271
    %v311 = vunpack.c.l.b16 %v272
    %v312 = vunpack.c.l.b16 %v273
    %v313 = vunpack.c.l.b16 %v274
    %v314 = vunpack.c.l.b16 %v275
    %v315 = vunpack.c.l.b16 %v276
    %v316 = vunpack.c.l.b16 %v277
    %v317 = vunpack.c.l.b16 %v278
    %v318 = vpack.c.b16 %v303, %v302
    %v319 = vpack.c.b16 %v305, %v304
    %v320 = vpack.c.b16 %v307, %v306
    %v321 = vpack.c.b16 %v309, %v308
    %v322 = vpack.c.b16 %v311, %v310
    %v323 = vpack.c.b16 %v313, %v312
    %v324 = vpack.c.b16 %v315, %v314
    %v325 = vpack.c.b16 %v317, %v316
    %334 = vmatprep.subr.bf16.mxu0 0
    %335 = vmatpush1.bf16.msra.mxu0 %v325
    %336 = vmatprep.subr.bf16.mxu0 0
    %337 = vmatpush1.bf16.msra.mxu0 %v324
    %338 = vmatprep.subr.bf16.mxu0 0
    %339 = vmatpush1.bf16.msra.mxu0 %v323
    %340 = vmatprep.subr.bf16.mxu0 0
    %341 = vmatpush1.bf16.msra.mxu0 %v322
    %342 = vmatprep.subr.bf16.mxu0 0
    %343 = vmatpush1.bf16.msra.mxu0 %v321
    %344 = vmatprep.subr.bf16.mxu0 0
    %345 = vmatpush1.bf16.msra.mxu0 %v320
    %346 = vmatprep.subr.bf16.mxu0 0
    %347 = vmatpush1.bf16.msra.mxu0 %v319
    %348 = vmatprep.subr.bf16.mxu0 0
    %349 = vmatpush1.bf16.msra.mxu0 %v318
    %350 = vmatprep.subr.bf16.mxu0 0
    %351 = vmatpush2.bf16.msra.mxu0 0
    %352 = vmatprep.subr.bf16.mxu0 0
    %353 = vmatpush2.bf16.msra.mxu0 0
    %354 = vmatprep.subr.bf16.mxu0 0
    %355 = vmatpush2.bf16.msra.mxu0 0
    %356 = vmatprep.subr.bf16.mxu0 0
    %357 = vmatpush2.bf16.msra.mxu0 0
    %358 = vmatprep.subr.bf16.mxu0 0
    %359 = vmatpush2.bf16.msra.mxu0 0
    %360 = vmatprep.subr.bf16.mxu0 0
    %361 = vmatpush2.bf16.msra.mxu0 0
    %362 = vmatprep.subr.bf16.mxu0 0
    %363 = vmatpush2.bf16.msra.mxu0 0
    %364 = vmatprep.subr.bf16.mxu0 0
    %365 = vmatpush2.bf16.msra.mxu0 0
    %366 = vmatprep.mubr.bf16.mxu0 0
    %367 = vmatmul.mubr.bf16.gmra.mxu0 %v262
    %v368 = vpop.f32.mrf.mxu0
    %v369 = vadd.f32 %v284, %v368
    %v370 = vpop.f32.mrf.mxu0
    %v371 = vpop.f32.mrf.mxu0
    %v372 = vpop.f32.mrf.mxu0
    %373 = vdwg.mxu0
    %v374 = vmax.f32 %v369, -0.5
    %v375 = vmin.f32 %v374, 0.5
    %vm376 = vcmask 7168
    %377 = vst.msk [vmem:[%s7] sm:$0xff] %vm376, %v375
    // Predicated region
    $region46: #{tpu_custom_call.1} parent=1 // pred_check
      _
    $region47: #{tpu_custom_call.1} parent=1 // pred_check_branch
      %379 = sbr.rel (0) target = $region49
    $region48: #{tpu_custom_call.1} parent=1 // pred_region
      _
    $region49: #{tpu_custom_call.1} parent=1 // pred_fallthru
      _
    // Predicated region
    $region50: #{tpu_custom_call.1} parent=1 // pred_check
      _
    $region51: #{tpu_custom_call.1} parent=1 // pred_check_branch
      %381 = sbr.rel (0) target = $region53
    $region52: #{tpu_custom_call.1} parent=1 // pred_region
      _
    $region53: #{tpu_custom_call.1} parent=1 // pred_fallthru
      _
    %382 = vsyncpa [#allocation3], 1
    %383 = vsyncpa [#allocation5], 1
    %384 = vsyncpa [#allocation8], 1

// kernel: tpu_custom_call.1
$region0: #{tpu_custom_call.1}
  #allocation0 [shape = 'u32[]', space=smem, size = 0x4, offset = 0x4, fixed_abs, tag = 'smem constant byte address 0x4 - core index']
  #allocation1 [shape = 'u32[144,128]{1,0:T(1,128)}', space=vmem, size = 0x12000, scoped, tag = 'internal scratch']
  %s0 = inlined_call_operand.hbm [shape: f32[8,32], index: 0, kind: input, shape index: {}]
  %s1 = inlined_call_operand.hbm [shape: bf16[32,128], index: 1, kind: input, shape index: {}]
  %s2 = inlined_call_operand.vmem [shape: f32[1,128], index: 2, kind: input, shape index: {}]
  %s3 = inlined_call_operand.hbm [shape: bf16[128,128], index: 3, kind: input, shape index: {}]
  %s4 = inlined_call_operand.vmem [shape: f32[1,128], index: 4, kind: input, shape index: {}]
  %s5 = inlined_call_operand.hbm [shape: bf16[128,128], index: 5, kind: input, shape index: {}]
  %s6 = inlined_call_operand.vmem [shape: f32[1,128], index: 6, kind: input, shape index: {}]
  %s7 = inlined_call_operand.vmem [shape: f32[8,1], index: 7, kind: output, shape index: {}]
  %s8 = sld [smem:[#allocation0]]
  $region54: #{tpu_custom_call.1} parent=0
    _
  %s10 = ssub.s32 1, %s8
  %s11 = scalar_select 0, %s10, %s8
  $region1: #{tpu_custom_call.1} parent=0
    #allocation2 [shape = 'u8[4096]{0}', space=vmem, size = 0x1000, scoped, tag = 'input window, operand 0, single buffered']
    #allocation3 [shape = 's32[1]{0}', space=sflag, size = 0x4, scoped, tag = 'scoped memory for tpu_custom_call.1']
    #allocation4 [shape = 'u8[8192]{0}', space=vmem, size = 0x2000, scoped, tag = 'input window, operand 1, single buffered']
    #allocation5 [shape = 's32[1]{0}', space=sflag, size = 0x4, scoped, tag = 'scoped memory for tpu_custom_call.1']
    #allocation6 [shape = 'u8[32768]{0}', space=vmem, size = 0x8000, scoped, tag = 'input window, operand 3, single buffered']
    #allocation7 [shape = 'u8[32768]{0}', space=vmem, size = 0x8000, scoped, tag = 'input window, operand 5, single buffered']
    #allocation8 [shape = 's32[1]{0}', space=sflag, size = 0x4, scoped, tag = 'scoped memory for tpu_custom_call.1']
    %12 = vsyncpa [#allocation3], 0
    %13 = vsyncpa [#allocation5], 0
    %14 = vsyncpa [#allocation8], 0
    // Predicated region
    $region2: #{tpu_custom_call.1} parent=1 // pred_check
      _
    $region3: #{tpu_custom_call.1} parent=1 // pred_check_branch
      %16 = sbr.rel (0) target = $region5
    $region4: #{tpu_custom_call.1} parent=1 // pred_region
      %s18 = ssub.s32 128, 128
      %19 = vsyncadd [#allocation3], %s18
      %s21 = sshll.u32 [#allocation2], 4
      %s22 = int_to_ptr.vmem [resolvable:$true] %s21
      %24 = dma.hbm_to_vmem [thread:$0]  %s0, 128, %s22, [#allocation3]
    $region5: #{tpu_custom_call.1} parent=1 // pred_fallthru
      _
    // Predicated region
    $region6: #{tpu_custom_call.1} parent=1 // pred_check
      _
    $region7: #{tpu_custom_call.1} parent=1 // pred_check_branch
      %26 = sbr.rel (0) target = $region9
    $region8: #{tpu_custom_call.1} parent=1 // pred_region
      %s28 = ssub.s32 256, 256
      %29 = vsyncadd [#allocation5], %s28
      %s30 = sshll.u32 [#allocation4], 4
      %s31 = int_to_ptr.vmem [resolvable:$true] %s30
      %36 = dma.hbm_to_vmem [thread:$0]  %s1, 256, %s31, [#allocation5], 64, 64, 4
    $region9: #{tpu_custom_call.1} parent=1 // pred_fallthru
      _
    // Predicated region
    $region10: #{tpu_custom_call.1} parent=1 // pred_check
      _
    $region11: #{tpu_custom_call.1} parent=1 // pred_check_branch
      %38 = sbr.rel (0) target = $region13
    $region12: #{tpu_custom_call.1} parent=1 // pred_region
      _
    $region13: #{tpu_custom_call.1} parent=1 // pred_fallthru
      _
    // Predicated region
    $region14: #{tpu_custom_call.1} parent=1 // pred_check
      _
    $region15: #{tpu_custom_call.1} parent=1 // pred_check_branch
      %40 = sbr.rel (0) target = $region17
    $region16: #{tpu_custom_call.1} parent=1 // pred_region
      %s42 = ssub.s32 1024, 1024
      %43 = vsyncadd [#allocation5], %s42
      %s44 = sshll.u32 [#allocation6], 4
      %s45 = int_to_ptr.vmem [resolvable:$true] %s44
      %50 = dma.hbm_to_vmem [thread:$0]  %s3, 1024, %s45, [#allocation5], 64, 64, 4
    $region17: #{tpu_custom_call.1} parent=1 // pred_fallthru
      _
    // Predicated region
    $region18: #{tpu_custom_call.1} parent=1 // pred_check
      _
    $region19: #{tpu_custom_call.1} parent=1 // pred_check_branch
      %52 = sbr.rel (0) target = $region21
    $region20: #{tpu_custom_call.1} parent=1 // pred_region
      _
    $region21: #{tpu_custom_call.1} parent=1 // pred_fallthru
      _
    // Predicated region
    $region22: #{tpu_custom_call.1} parent=1 // pred_check
      _
    $region23: #{tpu_custom_call.1} parent=1 // pred_check_branch
      %54 = sbr.rel (0) target = $region25
    $region24: #{tpu_custom_call.1} parent=1 // pred_region
      %s56 = ssub.s32 1024, 1024
      %57 = vsyncadd [#allocation8], %s56
      %s58 = sshll.u32 [#allocation7], 4
      %s59 = int_to_ptr.vmem [resolvable:$true] %s58
      %64 = dma.hbm_to_vmem [thread:$0]  %s5, 1024, %s59, [#allocation8], 64, 64, 4
    $region25: #{tpu_custom_call.1} parent=1 // pred_fallthru
      _
    // Predicated region
    $region26: #{tpu_custom_call.1} parent=1 // pred_check
      _
    $region27: #{tpu_custom_call.1} parent=1 // pred_check_branch
      %66 = sbr.rel (0) target = $region29
    $region28: #{tpu_custom_call.1} parent=1 // pred_region
      _
    $region29: #{tpu_custom_call.1} parent=1 // pred_fallthru
      _
    // Predicated region
    $region30: #{tpu_custom_call.1} parent=1 // pred_check
      _
    $region31: #{tpu_custom_call.1} parent=1 // pred_check_branch
      %68 = sbr.rel (0) target = $region33
    $region32: #{tpu_custom_call.1} parent=1 // pred_region
      %69 = dma.done [#allocation3], 128
    $region33: #{tpu_custom_call.1} parent=1 // pred_fallthru
      _
    // Predicated region
    $region34: #{tpu_custom_call.1} parent=1 // pred_check
      _
    $region35: #{tpu_custom_call.1} parent=1 // pred_check_branch
      %71 = sbr.rel (0) target = $region37
    $region36: #{tpu_custom_call.1} parent=1 // pred_region
      %72 = dma.done [#allocation5], 256
    $region37: #{tpu_custom_call.1} parent=1 // pred_fallthru
      _
    // Predicated region
    $region38: #{tpu_custom_call.1} parent=1 // pred_check
      _
    $region39: #{tpu_custom_call.1} parent=1 // pred_check_branch
      %74 = sbr.rel (0) target = $region41
    $region40: #{tpu_custom_call.1} parent=1 // pred_region
      %75 = dma.done [#allocation5], 1024
    $region41: #{tpu_custom_call.1} parent=1 // pred_fallthru
      _
    // Predicated region
    $region42: #{tpu_custom_call.1} parent=1 // pred_check
      _
    $region43: #{tpu_custom_call.1} parent=1 // pred_check_branch
      %77 = sbr.rel (0) target = $region45
    $region44: #{tpu_custom_call.1} parent=1 // pred_region
      %78 = dma.done [#allocation8], 1024
    $region45: #{tpu_custom_call.1} parent=1 // pred_fallthru
      _
    %v80 = vld [vmem:[#allocation2] sm:$0xff]
    %v81 = vpack.c.bf16 %v80, %v80
    %v82 = vld [vmem:[#allocation4] sm:$0xf]
    %v83 = vld [vmem:[#allocation4 + $0x4] sm:$0xf]
    %v84 = vld [vmem:[#allocation4 + $0x8] sm:$0xf]
    %v85 = vld [vmem:[#allocation4 + $0xc] sm:$0xf]
    %v86 = vld [vmem:[%s2] sm:$0x1]
    %v88 = vlaneseq
    %v89 = vshrl.u32 %v88, 7
    %v90 = vsub.s32 0, %v89
    %v91 = vrot.slane %v86, %v90
    %v97 = vunpack.c.l.b16 %v82
    %v98 = vunpack.c.l.b16 %v83
    %v99 = vunpack.c.l.b16 %v84
    %v100 = vunpack.c.l.b16 %v85
    %v101 = vpack.c.b16 %v98, %v97
    %v102 = vpack.c.b16 %v100, %v99
    %vm105 = vcmask 261120
    %v107 = vsel %vm105, %v81, 0
    %109 = vmatprep.subr.bf16.mxu0 0
    %110 = vmatpush1.bf16.msra.mxu0 0
    %111 = vmatprep.subr.bf16.mxu0 0
    %112 = vmatpush1.bf16.msra.mxu0 0
    %113 = vmatprep.subr.bf16.mxu0 0
    %114 = vmatpush1.bf16.msra.mxu0 0
    %115 = vmatprep.subr.bf16.mxu0 0
    %116 = vmatpush1.bf16.msra.mxu0 0
    %117 = vmatprep.subr.bf16.mxu0 0
    %118 = vmatpush1.bf16.msra.mxu0 0
    %119 = vmatprep.subr.bf16.mxu0 0
    %120 = vmatpush1.bf16.msra.mxu0 0
    %121 = vmatprep.subr.bf16.mxu0 0
    %122 = vmatpush1.bf16.msra.mxu0 %v102
    %123 = vmatprep.subr.bf16.mxu0 0
    %124 = vmatpush1.bf16.msra.mxu0 %v101
    %125 = vmatprep.subr.bf16.mxu0 0
    %126 = vmatpush2.bf16.msra.mxu0 0
    %127 = vmatprep.subr.bf16.mxu0 0
    %128 = vmatpush2.bf16.msra.mxu0 0
    %129 = vmatprep.subr.bf16.mxu0 0
    %130 = vmatpush2.bf16.msra.mxu0 0
    %131 = vmatprep.subr.bf16.mxu0 0
    %132 = vmatpush2.bf16.msra.mxu0 0
    %133 = vmatprep.subr.bf16.mxu0 0
    %134 = vmatpush2.bf16.msra.mxu0 0
    %135 = vmatprep.subr.bf16.mxu0 0
    %136 = vmatpush2.bf16.msra.mxu0 0
    %137 = vmatprep.subr.bf16.mxu0 0
    %138 = vmatpush2.bf16.msra.mxu0 0
    %139 = vmatprep.subr.bf16.mxu0 0
    %140 = vmatpush2.bf16.msra.mxu0 0
    %141 = vmatprep.mubr.bf16.mxu0 0
    %142 = vmatmul.mubr.bf16.gmra.mxu0 %v107
    %v143 = vpop.f32.mrf.mxu0
    %v144 = vadd.f32 %v91, %v143
    %v145 = vpop.f32.mrf.mxu0
    %v146 = vpop.f32.mrf.mxu0
    %v147 = vpop.f32.mrf.mxu0
    %148 = vdwg.mxu0
    %v149 = vmax.f32 %v144, 0.0
    %v150 = vpack.c.bf16 %v149, %v149
    %v151 = vld [vmem:[#allocation6] sm:$0xf]
    %v152 = vld [vmem:[#allocation6 + $0x4] sm:$0xf]
    %v153 = vld [vmem:[#allocation6 + $0x8] sm:$0xf]
    %v154 = vld [vmem:[#allocation6 + $0xc] sm:$0xf]
    %v155 = vld [vmem:[#allocation6 + $0x10] sm:$0xf]
    %v156 = vld [vmem:[#allocation6 + $0x14] sm:$0xf]
    %v157 = vld [vmem:[#allocation6 + $0x18] sm:$0xf]
    %v158 = vld [vmem:[#allocation6 + $0x1c] sm:$0xf]
    %v159 = vld [vmem:[#allocation6 + $0x20] sm:$0xf]
    %v160 = vld [vmem:[#allocation6 + $0x24] sm:$0xf]
    %v161 = vld [vmem:[#allocation6 + $0x28] sm:$0xf]
    %v162 = vld [vmem:[#allocation6 + $0x2c] sm:$0xf]
    %v163 = vld [vmem:[#allocation6 + $0x30] sm:$0xf]
    %v164 = vld [vmem:[#allocation6 + $0x34] sm:$0xf]
    %v165 = vld [vmem:[#allocation6 + $0x38] sm:$0xf]
    %v166 = vld [vmem:[#allocation6 + $0x3c] sm:$0xf]
    %v167 = vld [vmem:[%s4] sm:$0x1]
    %v169 = vlaneseq
    %v170 = vshrl.u32 %v169, 7
    %v171 = vsub.s32 0, %v170
    %v172 = vrot.slane %v167, %v171
    %v190 = vunpack.c.l.b16 %v151
    %v191 = vunpack.c.l.b16 %v152
    %v192 = vunpack.c.l.b16 %v153
    %v193 = vunpack.c.l.b16 %v154
    %v194 = vunpack.c.l.b16 %v155
    %v195 = vunpack.c.l.b16 %v156
    %v196 = vunpack.c.l.b16 %v157
    %v197 = vunpack.c.l.b16 %v158
    %v198 = vunpack.c.l.b16 %v159
    %v199 = vunpack.c.l.b16 %v160
    %v200 = vunpack.c.l.b16 %v161
    %v201 = vunpack.c.l.b16 %v162
    %v202 = vunpack.c.l.b16 %v163
    %v203 = vunpack.c.l.b16 %v164
    %v204 = vunpack.c.l.b16 %v165
    %v205 = vunpack.c.l.b16 %v166
    %v206 = vpack.c.b16 %v191, %v190
    %v207 = vpack.c.b16 %v193, %v192
    %v208 = vpack.c.b16 %v195, %v194
    %v209 = vpack.c.b16 %v197, %v196
    %v210 = vpack.c.b16 %v199, %v198
    %v211 = vpack.c.b16 %v201, %v200
    %v212 = vpack.c.b16 %v203, %v202
    %v213 = vpack.c.b16 %v205, %v204
    %222 = vmatprep.subr.bf16.mxu0 0
    %223 = vmatpush1.bf16.msra.mxu0 %v213
    %224 = vmatprep.subr.bf16.mxu0 0
    %225 = vmatpush1.bf16.msra.mxu0 %v212
    %226 = vmatprep.subr.bf16.mxu0 0
    %227 = vmatpush1.bf16.msra.mxu0 %v211
    %228 = vmatprep.subr.bf16.mxu0 0
    %229 = vmatpush1.bf16.msra.mxu0 %v210
    %230 = vmatprep.subr.bf16.mxu0 0
    %231 = vmatpush1.bf16.msra.mxu0 %v209
    %232 = vmatprep.subr.bf16.mxu0 0
    %233 = vmatpush1.bf16.msra.mxu0 %v208
    %234 = vmatprep.subr.bf16.mxu0 0
    %235 = vmatpush1.bf16.msra.mxu0 %v207
    %236 = vmatprep.subr.bf16.mxu0 0
    %237 = vmatpush1.bf16.msra.mxu0 %v206
    %238 = vmatprep.subr.bf16.mxu0 0
    %239 = vmatpush2.bf16.msra.mxu0 0
    %240 = vmatprep.subr.bf16.mxu0 0
    %241 = vmatpush2.bf16.msra.mxu0 0
    %242 = vmatprep.subr.bf16.mxu0 0
    %243 = vmatpush2.bf16.msra.mxu0 0
    %244 = vmatprep.subr.bf16.mxu0 0
    %245 = vmatpush2.bf16.msra.mxu0 0
    %246 = vmatprep.subr.bf16.mxu0 0
    %247 = vmatpush2.bf16.msra.mxu0 0
    %248 = vmatprep.subr.bf16.mxu0 0
    %249 = vmatpush2.bf16.msra.mxu0 0
    %250 = vmatprep.subr.bf16.mxu0 0
    %251 = vmatpush2.bf16.msra.mxu0 0
    %252 = vmatprep.subr.bf16.mxu0 0
    %253 = vmatpush2.bf16.msra.mxu0 0
    %254 = vmatprep.mubr.bf16.mxu0 0
    %255 = vmatmul.mubr.bf16.gmra.mxu0 %v150
    %v256 = vpop.f32.mrf.mxu0
    %v257 = vadd.f32 %v172, %v256
    %v258 = vpop.f32.mrf.mxu0
    %v259 = vpop.f32.mrf.mxu0
    %v260 = vpop.f32.mrf.mxu0
    %261 = vdwg.mxu0
    %v262 = vpack.c.bf16 %v257, %v257
    %v263 = vld [vmem:[#allocation7] sm:$0xf]
    %v264 = vld [vmem:[#allocation7 + $0x4] sm:$0xf]
    %v265 = vld [vmem:[#allocation7 + $0x8] sm:$0xf]
    %v266 = vld [vmem:[#allocation7 + $0xc] sm:$0xf]
    %v267 = vld [vmem:[#allocation7 + $0x10] sm:$0xf]
    %v268 = vld [vmem:[#allocation7 + $0x14] sm:$0xf]
    %v269 = vld [vmem:[#allocation7 + $0x18] sm:$0xf]
    %v270 = vld [vmem:[#allocation7 + $0x1c] sm:$0xf]
    %v271 = vld [vmem:[#allocation7 + $0x20] sm:$0xf]
    %v272 = vld [vmem:[#allocation7 + $0x24] sm:$0xf]
    %v273 = vld [vmem:[#allocation7 + $0x28] sm:$0xf]
    %v274 = vld [vmem:[#allocation7 + $0x2c] sm:$0xf]
    %v275 = vld [vmem:[#allocation7 + $0x30] sm:$0xf]
    %v276 = vld [vmem:[#allocation7 + $0x34] sm:$0xf]
    %v277 = vld [vmem:[#allocation7 + $0x38] sm:$0xf]
    %v278 = vld [vmem:[#allocation7 + $0x3c] sm:$0xf]
    %v279 = vld [vmem:[%s6] sm:$0x1]
    %v281 = vlaneseq
    %v282 = vshrl.u32 %v281, 7
    %v283 = vsub.s32 0, %v282
    %v284 = vrot.slane %v279, %v283
    %v302 = vunpack.c.l.b16 %v263
    %v303 = vunpack.c.l.b16 %v264
    %v304 = vunpack.c.l.b16 %v265
    %v305 = vunpack.c.l.b16 %v266
    %v306 = vunpack.c.l.b16 %v267
    %v307 = vunpack.c.l.b16 %v268
    %v308 = vunpack.c.l.b16 %v269
    %v309 = vunpack.c.l.b16 %v270
    %v310 = vunpack.c.l.b16 %v271
    %v311 = vunpack.c.l.b16 %v272
    %v312 = vunpack.c.l.b16 %v273
    %v313 = vunpack.c.l.b16 %v274
    %v314 = vunpack.c.l.b16 %v275
    %v315 = vunpack.c.l.b16 %v276
    %v316 = vunpack.c.l.b16 %v277
    %v317 = vunpack.c.l.b16 %v278
    %v318 = vpack.c.b16 %v303, %v302
    %v319 = vpack.c.b16 %v305, %v304
    %v320 = vpack.c.b16 %v307, %v306
    %v321 = vpack.c.b16 %v309, %v308
    %v322 = vpack.c.b16 %v311, %v310
    %v323 = vpack.c.b16 %v313, %v312
    %v324 = vpack.c.b16 %v315, %v314
    %v325 = vpack.c.b16 %v317, %v316
    %334 = vmatprep.subr.bf16.mxu0 0
    %335 = vmatpush1.bf16.msra.mxu0 %v325
    %336 = vmatprep.subr.bf16.mxu0 0
    %337 = vmatpush1.bf16.msra.mxu0 %v324
    %338 = vmatprep.subr.bf16.mxu0 0
    %339 = vmatpush1.bf16.msra.mxu0 %v323
    %340 = vmatprep.subr.bf16.mxu0 0
    %341 = vmatpush1.bf16.msra.mxu0 %v322
    %342 = vmatprep.subr.bf16.mxu0 0
    %343 = vmatpush1.bf16.msra.mxu0 %v321
    %344 = vmatprep.subr.bf16.mxu0 0
    %345 = vmatpush1.bf16.msra.mxu0 %v320
    %346 = vmatprep.subr.bf16.mxu0 0
    %347 = vmatpush1.bf16.msra.mxu0 %v319
    %348 = vmatprep.subr.bf16.mxu0 0
    %349 = vmatpush1.bf16.msra.mxu0 %v318
    %350 = vmatprep.subr.bf16.mxu0 0
    %351 = vmatpush2.bf16.msra.mxu0 0
    %352 = vmatprep.subr.bf16.mxu0 0
    %353 = vmatpush2.bf16.msra.mxu0 0
    %354 = vmatprep.subr.bf16.mxu0 0
    %355 = vmatpush2.bf16.msra.mxu0 0
    %356 = vmatprep.subr.bf16.mxu0 0
    %357 = vmatpush2.bf16.msra.mxu0 0
    %358 = vmatprep.subr.bf16.mxu0 0
    %359 = vmatpush2.bf16.msra.mxu0 0
    %360 = vmatprep.subr.bf16.mxu0 0
    %361 = vmatpush2.bf16.msra.mxu0 0
    %362 = vmatprep.subr.bf16.mxu0 0
    %363 = vmatpush2.bf16.msra.mxu0 0
    %364 = vmatprep.subr.bf16.mxu0 0
    %365 = vmatpush2.bf16.msra.mxu0 0
    %366 = vmatprep.mubr.bf16.mxu0 0
    %367 = vmatmul.mubr.bf16.gmra.mxu0 %v262
    %v368 = vpop.f32.mrf.mxu0
    %v369 = vadd.f32 %v284, %v368
    %v370 = vpop.f32.mrf.mxu0
    %v371 = vpop.f32.mrf.mxu0
    %v372 = vpop.f32.mrf.mxu0
    %373 = vdwg.mxu0
    %v374 = vmax.f32 %v369, -0.5
    %v375 = vmin.f32 %v374, 0.5
    %vm376 = vcmask 7168
    %377 = vst.msk [vmem:[%s7] sm:$0xff] %vm376, %v375
    // Predicated region
    $region46: #{tpu_custom_call.1} parent=1 // pred_check
      _
    $region47: #{tpu_custom_call.1} parent=1 // pred_check_branch
      %379 = sbr.rel (0) target = $region49
    $region48: #{tpu_custom_call.1} parent=1 // pred_region
      _
    $region49: #{tpu_custom_call.1} parent=1 // pred_fallthru
      _
    // Predicated region
    $region50: #{tpu_custom_call.1} parent=1 // pred_check
      _
    $region51: #{tpu_custom_call.1} parent=1 // pred_check_branch
      %381 = sbr.rel (0) target = $region53
    $region52: #{tpu_custom_call.1} parent=1 // pred_region
      _
    $region53: #{tpu_custom_call.1} parent=1 // pred_fallthru
      _
    %382 = vsyncpa [#allocation3], 1
    %383 = vsyncpa [#allocation5], 1
    %384 = vsyncpa [#allocation8], 1

</llo_original>
